<compile_context>
chip_gen: v7x
topology: tpu7x:2x2x1
jax: 0.10.0
libtpu: 0.0.40
codegen_flags: <defaults>
</compile_context>

<pallas_src>
import functools
import math

import jax
import jax.numpy as jnp
from jax.experimental import pallas as pl
from jax.experimental.pallas import tpu as pltpu


def _round_up(n: int, m: int) -> int:
    return ((n + m - 1) // m) * m


@functools.lru_cache(maxsize=1)
def _scoped_vmem_budget_bytes() -> int:
    """~50% of physical VMEM as the scoped-VMEM ceiling (gen-aware), with a
    conservative fallback that is safe on v5e/v6e (128 MiB) and v7x (64 MiB)."""
    try:
        cap = int(pltpu.get_tpu_info().vmem_capacity_bytes)
        return max(16 << 20, cap // 2)
    except Exception:
        return 32 << 20


def _make_weightnorm_kernel(reps: int):
    """w_ref: (1, lane_dim) f32 — asset_weights tiled `reps` times along lanes.
    out_ref: (tile_rows, lane_dim) output tile (each 128+-lane row packs `reps`
    sample rows)."""

    def kernel(w_ref, out_ref):
        w = w_ref[...]                                        # (1, lane_dim)
        clamped = jnp.maximum(w, 0.0)                         # clamp(min=0)
        denom = jnp.sum(clamped, axis=-1, keepdims=True)      # reps * sum(clamped)
        if reps > 1:
            denom = denom * jnp.float32(1.0 / reps)           # exact pow2 rescale
        row = (clamped / denom).astype(out_ref.dtype)         # (1, lane_dim)
        # Pure sublane broadcast + full-lane unmasked stores; hidden under the
        # output DMA stream.
        out_ref[...] = jnp.broadcast_to(row, out_ref.shape)

    return kernel


@functools.partial(jax.jit,
                   static_argnames=("tile_bytes", "out_dtype", "use_pallas"))
def minimal_net_forward(x, asset_weights, *, tile_bytes=8 << 20,
                        out_dtype=jnp.float32, use_pallas=None):
    """JAX wrapper mirroring MinimalNet.forward.

    x             : (n_samples, ...)   -- only the batch size is used
    asset_weights : (n_assets,)        -- WeightNorm parameter
    returns       : (n_samples, n_assets) out_dtype
    """
    n_samples = x.shape[0]
    n_assets = asset_weights.shape[0]
    w = asset_weights.astype(jnp.float32)
    itemsize = jnp.dtype(out_dtype).itemsize

    # --- tiny-problem fallback: kernel launch costs more than the write -----
    if use_pallas is None:
        use_pallas = n_samples * n_assets * itemsize >= (1 << 16)   # >= 64 KiB
    if not use_pallas:
        clamped = jnp.maximum(w, 0.0)
        row = clamped / jnp.sum(clamped)
        return jnp.broadcast_to(row[None, :],
                                (n_samples, n_assets)).astype(out_dtype)

    # --- lane-dense packing: lane_dim is ALWAYS a multiple of 128 ----------
    reps = 128 // math.gcd(n_assets, 128)        # power of two
    lane_dim = reps * n_assets                   # multiple of 128
    w_row = jnp.tile(w.reshape(1, n_assets), (1, reps))       # (1, lane_dim)

    # --- batch tiling sized by a VMEM byte budget ---------------------------
    rows = pl.cdiv(n_samples, reps)              # flat packed output rows
    sub = 8 if itemsize == 4 else (16 if itemsize == 2 else 32)
    budget = _scoped_vmem_budget_bytes()
    headroom = 4 << 20
    per_buf_cap = max(1 << 20, (budget - headroom) // 2)
    tile_bytes_eff = min(int(tile_bytes), per_buf_cap)
    row_bytes = lane_dim * itemsize
    tile_rows = max(sub, (tile_bytes_eff // row_bytes) // sub * sub)
    tile_rows_eff = min(tile_rows, _round_up(rows, sub))
    grid_len = pl.cdiv(rows, tile_rows_eff)

    # VMEM: double-buffered output tile + (small) double-buffered weight row.
    vmem_limit = min(
        2 * tile_rows_eff * lane_dim * itemsize
        + 2 * 8 * lane_dim * 4
        + headroom,
        budget)

    out_flat = pl.pallas_call(
        _make_weightnorm_kernel(reps),
        out_shape=jax.ShapeDtypeStruct((rows, lane_dim), out_dtype),
        grid=(grid_len,),
        in_specs=[pl.BlockSpec((1, lane_dim), lambda i: (0, 0))],   # VMEM-resident
        out_specs=pl.BlockSpec((tile_rows_eff, lane_dim), lambda i: (i, 0)),
        compiler_params=pltpu.CompilerParams(
            dimension_semantics=("parallel",),   # shard tiles across TCs
            vmem_limit_bytes=int(vmem_limit),
        ),
    )(w_row)

    # Free row-major unpack of the lane-dense slab.  The slice is a no-op when
    # n_samples % reps == 0; otherwise it costs one copy (unavoidable here).
    out = out_flat.reshape(rows * reps, n_assets)
    if rows * reps != n_samples:
        out = out[:n_samples]
    return out


if __name__ == "__main__":
    key = jax.random.PRNGKey(0)
    k_x, k_w, k_w2 = jax.random.split(key, 3)

    n_samples, n_channels, lookback, n_assets = 2, 4, 16, 16

    # Example input in the PyTorch (n_samples, n_channels, lookback, n_assets)
    # convention; its values never affect the output (only batch size matters).
    x = jax.random.normal(k_x, (n_samples, n_channels, lookback, n_assets),
                          dtype=jnp.float32)

    # WeightNorm parameter (torch.ones(n_assets) in __init__); perturb so the
    # clamp/normalize path is non-trivial.
    asset_weights = jnp.ones((n_assets,), dtype=jnp.float32) \
        + jax.random.normal(k_w, (n_assets,), dtype=jnp.float32)

    # Pure-JAX reference (same semantics as the PyTorch module).
    clamped = jnp.maximum(asset_weights, 0.0)
    ref_row = clamped / jnp.sum(clamped)

    # 1) Small example, forcing the Pallas path so the kernel is exercised.
    out_small = jax.block_until_ready(
        minimal_net_forward(x, asset_weights, use_pallas=True))
    assert out_small.shape == (n_samples, n_assets)
    assert jnp.allclose(
        out_small, jnp.broadcast_to(ref_row[None, :], (n_samples, n_assets)),
        atol=1e-5, rtol=1e-5)
    assert jnp.allclose(jnp.sum(out_small, axis=1), 1.0, atol=1e-5)

    # 2) Larger batch, multi-step tiled grid (reps=8 -> rows=16384; with a
    #    4 MiB tile -> tile_rows=8192 -> 2 grid steps, double-buffered).
    n_big = 131072
    x_big = jnp.zeros((n_big, 1, 1, n_assets), dtype=jnp.float32)
    out_big = jax.block_until_ready(
        minimal_net_forward(x_big, asset_weights, tile_bytes=4 << 20))
    assert out_big.shape == (n_big, n_assets)
    assert jnp.allclose(
        out_big, jnp.broadcast_to(ref_row[None, :], (n_big, n_assets)),
        atol=1e-5, rtol=1e-5)
    assert jnp.allclose(jnp.sum(out_big, axis=1), 1.0, atol=1e-4)

    # 3) n_assets that does NOT divide 128 (gcd path: reps=8, lane_dim=384)
    #    and an n_samples not divisible by reps (exercises the ragged tail).
    n_assets2, n_samples2 = 48, 4099
    w2 = jnp.ones((n_assets2,), dtype=jnp.float32) \
        + jax.random.normal(k_w2, (n_assets2,), dtype=jnp.float32)
    x2 = jnp.zeros((n_samples2, 1, 1, n_assets2), dtype=jnp.float32)
    c2 = jnp.maximum(w2, 0.0)
    ref2 = c2 / jnp.sum(c2)
    out2 = jax.block_until_ready(
        minimal_net_forward(x2, w2, use_pallas=True))
    assert out2.shape == (n_samples2, n_assets2)
    assert jnp.allclose(
        out2, jnp.broadcast_to(ref2[None, :], (n_samples2, n_assets2)),
        atol=1e-5, rtol=1e-5)

    # 4) Auto-dispatch uses the cheap pure-JAX path for the tiny example.
    out_auto = jax.block_until_ready(minimal_net_forward(x, asset_weights))
    assert jnp.allclose(out_auto, out_small, atol=1e-5, rtol=1e-5)

    print("KERNEL_OK")
</pallas_src>

<mosaic_0001>
module attributes {stable_mosaic.version = 11 : i64} {
  func.func @kernel(%arg0: i32, %arg1: memref<1x128xf32, #tpu.memory_space<vmem>>, %arg2: memref<8x128xf32, #tpu.memory_space<vmem>>) attributes {dimension_semantics = [#tpu.dimension_semantics<parallel>], iteration_bounds = array<i64: 1>, scalar_prefetch = 0 : i64, scratch_operands = 0 : i64, tpu.core_type = #tpu.core_type<tc>, window_params = [{pipeline_mode = #tpu.pipeline_mode<synchronous>, transform_indices = @transform_0, window_bounds = array<i64: 1, 128>}, {transform_indices = @transform_1, window_bounds = array<i64: 8, 128>}]} {
    %c0 = arith.constant 0 : index
    %c0_0 = arith.constant 0 : index
    %0 = vector.load %arg1[%c0, %c0_0] : memref<1x128xf32, #tpu.memory_space<vmem>>, vector<1x128xf32>
    %cst = arith.constant 0.000000e+00 : f32
    %1 = vector.broadcast %cst : f32 to vector<1x128xf32>
    %2 = arith.maximumf %0, %1 : vector<1x128xf32>
    %cst_1 = arith.constant dense<0.000000e+00> : vector<1xf32>
    %3 = vector.multi_reduction <add>, %2, %cst_1 [1] : vector<1x128xf32> to vector<1xf32>
    %4 = vector.shape_cast %3 : vector<1xf32> to vector<1x1xf32>
    %cst_2 = arith.constant 1.250000e-01 : f32
    %5 = vector.broadcast %cst_2 : f32 to vector<1x1xf32>
    %6 = arith.mulf %4, %5 : vector<1x1xf32>
    %7 = vector.broadcast %6 : vector<1x1xf32> to vector<1x128xf32>
    %8 = arith.divf %2, %7 : vector<1x128xf32>
    %9 = vector.shape_cast %8 : vector<1x128xf32> to vector<1x128xf32>
    %10 = vector.broadcast %9 : vector<1x128xf32> to vector<8x128xf32>
    %c0_3 = arith.constant 0 : index
    %c0_4 = arith.constant 0 : index
    %11 = vector.load %arg2[%c0_3, %c0_4] : memref<8x128xf32, #tpu.memory_space<vmem>>, vector<8x128xf32>
    tpu.vector_store %arg2[%c0_3, %c0_4], %10 {strides = array<i32>} : memref<8x128xf32, #tpu.memory_space<vmem>>, vector<8x128xf32>,
    return
  }
  func.func @transform_0(%arg0: i32) -> (i32, i32) {
    %c0_i32 = arith.constant 0 : i32
    %c0_i32_0 = arith.constant 0 : i32
    %c0_i32_1 = arith.constant 0 : i32
    return %c0_i32, %c0_i32_0 : i32, i32
  }
  func.func @transform_1(%arg0: i32) -> (i32, i32) {
    %c0_i32 = arith.constant 0 : i32
    %c0_i32_0 = arith.constant 0 : i32
    return %arg0, %c0_i32 : i32, i32
  }
}

</mosaic_0001>

<llo_original>
// kernel: minimal_net_forward.1
$region0: #{minimal_net_forward.1}
  #allocation0 [shape = 'u32[]', space=smem, size = 0x4, offset = 0x4, fixed_abs, tag = 'smem constant byte address 0x4 - core index']
  #allocation1 [shape = 'u32[144,128]{1,0:T(1,128)}', space=vmem, size = 0x12000, scoped, tag = 'internal scratch']
  %s0 = inlined_call_operand.vmem [shape: f32[1,128], index: 0, kind: input, shape index: {}]
  %s1 = inlined_call_operand.vmem [shape: f32[1,128], index: 1, kind: output, shape index: {}]
  %s2 = sld [smem:[#allocation0]]
  $region44: #{minimal_net_forward.1} parent=0
    _
  %s4 = ssub.s32 1, %s2
  %s5 = scalar_select 0, %s4, %s2
  $region1: #{minimal_net_forward.1} parent=0
    #allocation2 [shape = 'u8[4096]{0}', space=vmem, size = 0x1000, scoped, tag = 'output window, operand 0, single buffered']
    // Predicated region
    $region2: #{minimal_net_forward.1} parent=1 // pred_check
      _
    $region3: #{minimal_net_forward.1} parent=1 // pred_check_branch
      %7 = sbr.rel (0) target = $region5
    $region4: #{minimal_net_forward.1} parent=1 // pred_region
      _
    $region5: #{minimal_net_forward.1} parent=1 // pred_fallthru
      _
    %v8 = vld [vmem:[%s0] sm:$0x1]
    %v9 = vmax.f32 %v8, 0.0
    %vm10 = vcmask 1040384
    %v11 = vsel %vm10, %v9, 0.0
    %12 = vadd.xlane.f32.xlu0 %v11
    %v13 = vpop.xlane.xlu0 %12
    %v14 = vmul.f32 %v13, 0.125
    %v15 = vrcp.pop %v14
    %v16 = vmul.f32 %v9, %v15
    %v18 = vlaneseq
    %v19 = vshrl.u32 %v18, 7
    %v20 = vsub.s32 0, %v19
    %v21 = vrot.slane %v16, %v20
    %23 = vst [vmem:[#allocation2] sm:$0xff] %v21
    // Predicated region
    $region6: #{minimal_net_forward.1} parent=1 // pred_check
      _
    $region7: #{minimal_net_forward.1} parent=1 // pred_check_branch
      %25 = sbr.rel (0) target = $region9
    $region8: #{minimal_net_forward.1} parent=1 // pred_region
      // Predicated region
      $region10: #{minimal_net_forward.1} parent=8 // pred_check
        _
      $region11: #{minimal_net_forward.1} parent=8 // pred_check_branch
        %27 = sbr.rel (0) target = $region13
      $region12: #{minimal_net_forward.1} parent=8 // pred_region
        // Predicated region
        $region14: #{minimal_net_forward.1} parent=12 // pred_check
          _
        $region15: #{minimal_net_forward.1} parent=12 // pred_check_branch
          %29 = sbr.rel target = $region17
        $region16: #{minimal_net_forward.1} parent=12 // pred_region
          // Predicated region
          $region29: #{minimal_net_forward.1} parent=16 // pred_check
            _
          $region30: #{minimal_net_forward.1} parent=16 // pred_check_branch
            %44 = sbr.rel (0) target = $region32
          $region31: #{minimal_net_forward.1} parent=16 // pred_region
            loop: start=0, step=1, limit=1
            $region33: #{minimal_net_forward.1} parent=31 // loop_pre_header
              _
            $region34: #{minimal_net_forward.1} parent=31 // loop_header
              %s47 = sphi 0, %s51
              %p48 = scmp.ge.s32.totalorder %s47, 1
              %s52 = sphi [#allocation2], [#allocation2]
              %s53 = sphi %s1, %s1
            $region35: #{minimal_net_forward.1} parent=31 // loop_header_branch
              %50 = sbr.rel (%p48) target = $region39
            $region36: #{minimal_net_forward.1} parent=31 // loop_body
              %v54 = vld [vmem:[%s52] sm:$0x1]
              %55 = vst [vmem:[%s53] sm:$0x1] %v54
            $region37: #{minimal_net_forward.1} parent=31 // loop_footer
              %s51 = sadd.s32 1, %s47
            $region38: #{minimal_net_forward.1} parent=31 // loop_footer_branch
              %46 = sbr.rel target = $region34
            $region39: #{minimal_net_forward.1} parent=31 // loop_exit
              _
          $region32: #{minimal_net_forward.1} parent=16 // pred_fallthru
            _
        $region17: #{minimal_net_forward.1} parent=12 // pred_fallthru
          _
        // Predicated region
        $region18: #{minimal_net_forward.1} parent=12 // pred_check
          _
        $region19: #{minimal_net_forward.1} parent=12 // pred_check_branch
          %31 = sbr.rel (0) target = $region21
        $region20: #{minimal_net_forward.1} parent=12 // pred_region
          loop: start=0, step=1, limit=1
          $region22: #{minimal_net_forward.1} parent=20 // loop_pre_header
            _
          $region23: #{minimal_net_forward.1} parent=20 // loop_header
            %s34 = sphi 0, %s38
            %p35 = scmp.ge.s32.totalorder %s34, 1
            %s39 = sphi [#allocation2], [#allocation2]
            %s40 = sphi %s1, %s1
          $region24: #{minimal_net_forward.1} parent=20 // loop_header_branch
            %37 = sbr.rel (%p35) target = $region28
          $region25: #{minimal_net_forward.1} parent=20 // loop_body
            %v41 = vld [vmem:[%s39] sm:$0x1]
            %42 = vst [vmem:[%s40] sm:$0x1] %v41
          $region26: #{minimal_net_forward.1} parent=20 // loop_footer
            %s38 = sadd.s32 1, %s34
          $region27: #{minimal_net_forward.1} parent=20 // loop_footer_branch
            %33 = sbr.rel target = $region23
          $region28: #{minimal_net_forward.1} parent=20 // loop_exit
            _
        $region21: #{minimal_net_forward.1} parent=12 // pred_fallthru
          _
      $region13: #{minimal_net_forward.1} parent=8 // pred_fallthru
        _
      %56 = vnop
    $region9: #{minimal_net_forward.1} parent=1 // pred_fallthru
      _
    // Predicated region
    $region40: #{minimal_net_forward.1} parent=1 // pred_check
      _
    $region41: #{minimal_net_forward.1} parent=1 // pred_check_branch
      %58 = sbr.rel (0) target = $region43
    $region42: #{minimal_net_forward.1} parent=1 // pred_region
      _
    $region43: #{minimal_net_forward.1} parent=1 // pred_fallthru
      _

</llo_original>
